<compile_context>
chip_gen: v6e
topology: v6e:2x2x1
jax: 0.10.0
libtpu: 0.0.40
codegen_flags: <defaults>
</compile_context>

<pallas_src>
import functools

import jax
import jax.numpy as jnp
from jax.experimental import pallas as pl
from jax.experimental.pallas import tpu as pltpu

NEG_LARGE = -1e30  # pad value for class lanes (finite to avoid inf-inf -> NaN)


def _margin_loss_kernel(x_ref, t_ref, o_ref, *, margin_scale):
    """x_ref: (TN, Cp) logits, t_ref: (TN, 1) int32, o_ref: (TN, 1) f32 per-row CE."""
    x = x_ref[...].astype(jnp.float32)                       # (TN, Cp)
    t = t_ref[...]                                           # (TN, 1) int32
    tn, cp = x.shape

    # one-hot mask, built once, consumed twice (no jnp.where selects)
    cls_ids = jax.lax.broadcasted_iota(jnp.int32, (tn, cp), 1)
    onehot = (cls_ids == t).astype(jnp.float32)              # (TN, Cp)

    # margin applied only at the target lane: adj == torch "output"
    adj = x - margin_scale * onehot

    # numerically stable log-sum-exp over classes (pad lanes are ~ -1e30 -> exp ~ 0)
    mx = jnp.max(adj, axis=-1, keepdims=True)                # (TN, 1)
    sumexp = jnp.sum(jnp.exp(adj - mx), axis=-1, keepdims=True)
    lse = mx + jnp.log(sumexp)

    # margin-adjusted target logit via multiply-reduce (onehot * adj)
    tgt = jnp.sum(onehot * adj, axis=-1, keepdims=True)      # (TN, 1)

    o_ref[...] = lse - tgt                                   # per-row cross entropy


def margin_loss(x, target, m=0.2, s=10.0):
    """x: (N, C) float logits (f32 or bf16); target: (N,) int class ids. Scalar f32."""
    n, c = x.shape
    itemsize = jnp.dtype(x.dtype).itemsize

    # lane-dense class axis: pad classes up to a multiple of 128
    c_pad = max(128, pl.cdiv(c, 128) * 128)

    # batch tile: ~2 MiB per x block (x 2 pipeline buffers stays well under the
    # 32 MiB scoped default and v7x's 64 MiB physical VMEM)
    target_block_bytes = 2 * 1024 * 1024
    tn = max(8, (target_block_bytes // (c_pad * itemsize)) // 8 * 8)
    tn = min(tn, pl.cdiv(n, 8) * 8)
    n_pad = pl.cdiv(n, tn) * tn

    xp = x
    if c_pad != c:
        xp = jnp.pad(xp, ((0, 0), (0, c_pad - c)), constant_values=NEG_LARGE)
    if n_pad != n:
        xp = jnp.pad(xp, ((0, n_pad - n), (0, 0)), constant_values=0.0)
    tp = jnp.pad(target.astype(jnp.int32), (0, n_pad - n)).reshape(n_pad, 1)

    grid = (n_pad // tn,)
    kernel = functools.partial(_margin_loss_kernel, margin_scale=float(m) * float(s))

    per_row = pl.pallas_call(
        kernel,
        out_shape=jax.ShapeDtypeStruct((n_pad, 1), jnp.float32),
        grid_spec=pltpu.PrefetchScalarGridSpec(
            num_scalar_prefetch=0,
            grid=grid,
            in_specs=[
                pl.BlockSpec((tn, c_pad), lambda i: (i, 0)),   # logits tile
                pl.BlockSpec((tn, 1), lambda i: (i, 0)),       # targets tile
            ],
            out_specs=pl.BlockSpec((tn, 1), lambda i: (i, 0)), # per-row losses
        ),
        compiler_params=pltpu.CompilerParams(
            dimension_semantics=("parallel",),                 # no cross-step state
            vmem_limit_bytes=48 * 1024 * 1024,
        ),
        cost_estimate=pl.CostEstimate(
            flops=5 * n_pad * c_pad,
            transcendentals=n_pad * c_pad + n_pad,
            bytes_accessed=n_pad * c_pad * itemsize + 2 * n_pad * 4,
        ),
    )(xp, tp)

    # reduction='mean' over the real (unpadded) rows
    return jnp.sum(per_row[:n, 0]) / n


def margin_loss_ref(x, target, m=0.2, s=10.0):
    """Pure-JAX reference mirroring the PyTorch module."""
    c = x.shape[1]
    onehot = jax.nn.one_hot(target, c, dtype=jnp.float32)
    out = x.astype(jnp.float32) - m * s * onehot
    lse = jax.nn.logsumexp(out, axis=-1)
    tgt = jnp.take_along_axis(out, target[:, None], axis=-1)[:, 0]
    return jnp.mean(lse - tgt)


if __name__ == "__main__":
    key = jax.random.PRNGKey(0)

    # small shape consistent with the module (exercises class + batch padding)
    k1, k2, k3, k4 = jax.random.split(key, 4)
    n1, c1 = 12, 20
    x1 = jax.random.normal(k1, (n1, c1), dtype=jnp.float32) * 3.0
    t1 = jax.random.randint(k2, (n1,), 0, c1, dtype=jnp.int32)
    loss1 = margin_loss(x1, t1)
    jax.block_until_ready(loss1)
    ref1 = margin_loss_ref(x1, t1)
    assert jnp.allclose(loss1, ref1, atol=1e-5, rtol=1e-5), (loss1, ref1)

    # moderate shape that exercises a multi-block batch grid (4 grid steps)
    n2, c2 = 2048, 1024
    x2 = jax.random.normal(k3, (n2, c2), dtype=jnp.float32) * 3.0
    t2 = jax.random.randint(k4, (n2,), 0, c2, dtype=jnp.int32)
    loss2 = margin_loss(x2, t2)
    jax.block_until_ready(loss2)
    ref2 = margin_loss_ref(x2, t2)
    assert jnp.allclose(loss2, ref2, atol=1e-4, rtol=1e-4), (loss2, ref2)

    print("KERNEL_OK")
</pallas_src>

<mosaic_0001>
module attributes {stable_mosaic.version = 11 : i64} {
  func.func @_margin_loss_kernel(%arg0: i32, %arg1: memref<16x128xf32, #tpu.memory_space<vmem>>, %arg2: memref<16x1xi32, #tpu.memory_space<vmem>>, %arg3: memref<16x1xf32, #tpu.memory_space<vmem>>) attributes {dimension_semantics = [#tpu.dimension_semantics<parallel>], iteration_bounds = array<i64: 1>, scalar_prefetch = 0 : i64, scratch_operands = 0 : i64, tpu.core_type = #tpu.core_type<tc>, window_params = [{transform_indices = @transform_0, window_bounds = array<i64: 16, 128>}, {transform_indices = @transform_1, window_bounds = array<i64: 16, 1>}, {transform_indices = @transform_2, window_bounds = array<i64: 16, 1>}]} {
    %c0 = arith.constant 0 : index
    %c0_0 = arith.constant 0 : index
    %0 = vector.load %arg1[%c0, %c0_0] : memref<16x128xf32, #tpu.memory_space<vmem>>, vector<16x128xf32>
    %c0_1 = arith.constant 0 : index
    %c0_2 = arith.constant 0 : index
    %1 = vector.load %arg2[%c0_1, %c0_2] : memref<16x1xi32, #tpu.memory_space<vmem>>, vector<16x1xi32>
    %2 = tpu.iota {dimensions = array<i32: 1>} : vector<16x128xi32>
    %3 = vector.broadcast %1 : vector<16x1xi32> to vector<16x128xi32>
    %4 = arith.cmpi eq, %2, %3 : vector<16x128xi32>
    %5 = arith.extui %4 : vector<16x128xi1> to vector<16x128xi32>
    %6 = arith.sitofp %5 : vector<16x128xi32> to vector<16x128xf32>
    %cst = arith.constant 2.000000e+00 : f32
    %7 = vector.broadcast %cst : f32 to vector<16x128xf32>
    %8 = arith.mulf %7, %6 : vector<16x128xf32>
    %9 = arith.subf %0, %8 : vector<16x128xf32>
    %cst_3 = arith.constant dense<0xFF800000> : vector<16xf32>
    %10 = vector.multi_reduction <maximumf>, %9, %cst_3 [1] : vector<16x128xf32> to vector<16xf32>
    %11 = vector.shape_cast %10 : vector<16xf32> to vector<16x1xf32>
    %12 = vector.broadcast %11 : vector<16x1xf32> to vector<16x128xf32>
    %13 = arith.subf %9, %12 : vector<16x128xf32>
    %14 = math.exp %13 : vector<16x128xf32>
    %cst_4 = arith.constant dense<0.000000e+00> : vector<16xf32>
    %15 = vector.multi_reduction <add>, %14, %cst_4 [1] : vector<16x128xf32> to vector<16xf32>
    %16 = vector.shape_cast %15 : vector<16xf32> to vector<16x1xf32>
    %17 = math.log %16 : vector<16x1xf32>
    %18 = arith.addf %11, %17 : vector<16x1xf32>
    %19 = arith.mulf %6, %9 : vector<16x128xf32>
    %cst_5 = arith.constant dense<0.000000e+00> : vector<16xf32>
    %20 = vector.multi_reduction <add>, %19, %cst_5 [1] : vector<16x128xf32> to vector<16xf32>
    %21 = vector.shape_cast %20 : vector<16xf32> to vector<16x1xf32>
    %22 = arith.subf %18, %21 : vector<16x1xf32>
    %c0_6 = arith.constant 0 : index
    %c0_7 = arith.constant 0 : index
    %23 = vector.load %arg3[%c0_6, %c0_7] : memref<16x1xf32, #tpu.memory_space<vmem>>, vector<16x1xf32>
    tpu.vector_store %arg3[%c0_6, %c0_7], %22 {strides = array<i32>} : memref<16x1xf32, #tpu.memory_space<vmem>>, vector<16x1xf32>,
    return
  }
  func.func @transform_0(%arg0: i32) -> (i32, i32) {
    %c0_i32 = arith.constant 0 : i32
    %c0_i32_0 = arith.constant 0 : i32
    return %arg0, %c0_i32 : i32, i32
  }
  func.func @transform_1(%arg0: i32) -> (i32, i32) {
    %c0_i32 = arith.constant 0 : i32
    %c0_i32_0 = arith.constant 0 : i32
    return %arg0, %c0_i32 : i32, i32
  }
  func.func @transform_2(%arg0: i32) -> (i32, i32) {
    %c0_i32 = arith.constant 0 : i32
    %c0_i32_0 = arith.constant 0 : i32
    return %arg0, %c0_i32 : i32, i32
  }
}

</mosaic_0001>

<llo_original>
// kernel: tpu_custom_call.1
$region0: #{tpu_custom_call.1}
  #allocation0 [shape = 'u32[]', space=smem, size = 0x4, offset = 0x4, fixed_abs, tag = 'smem constant byte address 0x4 - core index']
  #allocation1 [shape = 'u32[144,128]{1,0:T(1,128)}', space=vmem, size = 0x12000, scoped, tag = 'internal scratch']
  %s0 = inlined_call_operand.vmem [shape: f32[16,128], index: 0, kind: input, shape index: {}]
  %s1 = inlined_call_operand.vmem [shape: s32[16,1], index: 1, kind: input, shape index: {}]
  %s2 = inlined_call_operand.vmem [shape: f32[16,1], index: 2, kind: output, shape index: {}]
  %s3 = sld [smem:[#allocation0]]
  $region18: #{tpu_custom_call.1} parent=0
    _
  %s5 = ssub.s32 1, %s3
  %s6 = scalar_select 0, %s5, %s3
  // Predicated region
  $region2: #{tpu_custom_call.1} parent=0 // pred_check
    _
  $region3: #{tpu_custom_call.1} parent=0 // pred_check_branch
    %8 = sbr.rel (0) target = $region5
  $region4: #{tpu_custom_call.1} parent=0 // pred_region
    _
  $region5: #{tpu_custom_call.1} parent=0 // pred_fallthru
    _
  // Predicated region
  $region6: #{tpu_custom_call.1} parent=0 // pred_check
    _
  $region7: #{tpu_custom_call.1} parent=0 // pred_check_branch
    %10 = sbr.rel (0) target = $region9
  $region8: #{tpu_custom_call.1} parent=0 // pred_region
    _
  $region9: #{tpu_custom_call.1} parent=0 // pred_fallthru
    _
  %v11 = vld [vmem:[%s0] sm:$0xff]
  %v12 = vld [vmem:[%s0 + $0x8] sm:$0xff]
  %v13 = vld [vmem:[%s1] sm:$0xff]
  %v14 = vld [vmem:[%s1 + $0x8] sm:$0xff]
  %v15 = vlaneseq
  %v16 = vand.u32 %v15, 127
  %17 = vset.pattern.permute.xlu0 0
  %18 = vperm.xlu0 %17, %v13
  %v19 = vpop.permute.xlu0 %18
  %20 = vset.pattern.permute.xlu0 0
  %21 = vperm.xlu0 %20, %v14
  %v22 = vpop.permute.xlu0 %21
  %vm23 = vcmp.eq.s32.totalorder %v16, %v19
  %vm24 = vcmp.eq.s32.totalorder %v16, %v22
  %v25 = vsel %vm23, 1, 0
  %v26 = vsel %vm24, 1, 0
  %v27 = vcvt.s32.f32 %v25
  %v28 = vcvt.s32.f32 %v26
  %v29 = vmul.f32 %v27, 2.0
  %v30 = vmul.f32 %v28, 2.0
  %v31 = vsub.f32 %v11, %v29
  %v32 = vsub.f32 %v12, %v30
  %33 = vmax.xlane.f32.xlu0 %v31
  %v34 = vpop.xlane.xlu0 %33
  %35 = vmax.xlane.f32.xlu0 %v32
  %v36 = vpop.xlane.xlu0 %35
  %v37 = vsub.f32 %v31, %v34
  %v38 = vsub.f32 %v32, %v36
  %v39 = vmul.f32 %v37, 1.442695
  %v40 = vpow.pop %v39
  %v41 = vmul.f32 %v38, 1.442695
  %v42 = vpow.pop %v41
  %43 = vadd.xlane.f32.xlu0 %v40
  %v44 = vpop.xlane.xlu0 %43
  %45 = vadd.xlane.f32.xlu0 %v42
  %v46 = vpop.xlane.xlu0 %45
  %v47 = vlog2.pop %v44
  %v48 = vmul.f32 %v47, 0.6931472
  %v49 = vlog2.pop %v46
  %v50 = vmul.f32 %v49, 0.6931472
  %v51 = vadd.f32 %v34, %v48
  %v52 = vadd.f32 %v36, %v50
  %v53 = vmul.f32 %v27, %v31
  %v54 = vmul.f32 %v28, %v32
  %55 = vadd.xlane.f32.xlu0 %v53
  %v56 = vpop.xlane.xlu0 %55
  %57 = vadd.xlane.f32.xlu0 %v54
  %v58 = vpop.xlane.xlu0 %57
  %v59 = vsub.f32 %v51, %v56
  %v60 = vsub.f32 %v52, %v58
  %vm61 = vcmask 7168
  %62 = vst.msk [vmem:[%s2] sm:$0xff] %vm61, %v59
  %63 = vst.msk [vmem:[%s2 + $0x8] sm:$0xff] %vm61, %v60
  // Predicated region
  $region10: #{tpu_custom_call.1} parent=0 // pred_check
    _
  $region11: #{tpu_custom_call.1} parent=0 // pred_check_branch
    %65 = sbr.rel (0) target = $region13
  $region12: #{tpu_custom_call.1} parent=0 // pred_region
    _
  $region13: #{tpu_custom_call.1} parent=0 // pred_fallthru
    _
  // Predicated region
  $region14: #{tpu_custom_call.1} parent=0 // pred_check
    _
  $region15: #{tpu_custom_call.1} parent=0 // pred_check_branch
    %67 = sbr.rel (0) target = $region17
  $region16: #{tpu_custom_call.1} parent=0 // pred_region
    _
  $region17: #{tpu_custom_call.1} parent=0 // pred_fallthru
    _

</llo_original>
